<compile_context>
chip_gen: v7x
topology: tpu7x:2x2x1
jax: 0.10.0
libtpu: 0.0.40
codegen_flags: <defaults>
</compile_context>

<pallas_src>
import random

import jax
import jax.numpy as jnp
import numpy as np
from jax.experimental import pallas as pl
from jax.experimental.pallas import tpu as pltpu


# ----------------------------------------------------------------------------
# BitGenerator (same semantics as the PyTorch helper, deterministic string mode)
# ----------------------------------------------------------------------------
class BitGenerator:
    def __init__(self, string=None):
        self.random = string is None
        if string:
            assert isinstance(string, str)
            bits = "".join(f"{ord(c):08b}" for c in string + "\t")
            self.string = list(map(int, bits))
        self.index = 0

    def __next__(self):
        if self.random:
            return random.randint(0, 1)
        bit = self.string[self.index % len(self.string)]
        self.index += 1
        return bit

    def get(self, n):
        return [next(self) for _ in range(n)]


# ----------------------------------------------------------------------------
# Pallas kernel
#   per grid step (one TILE_L x C_pad block of layers):
#     val        = relu(gamma_0 - w * sign)          (padded channels -> exactly 0)
#     layer_sums = sum(val, axis=channels)           (one XLU reduce per block)
#     partial    = sum(layer_sums * (1/C_l))         (per-layer mean, padded rows scale 0)
#     acc       += partial                           (resident (1,1) output block)
# ----------------------------------------------------------------------------
def _make_sign_loss_kernel(gamma_0: float):
    def kernel(w_ref, s_ref, rs_ref, o_ref):
        @pl.when(pl.program_id(0) == 0)
        def _init():
            o_ref[...] = jnp.zeros_like(o_ref)

        w = w_ref[...]                                   # (TILE_L, C_pad) f32
        s = s_ref[...].astype(jnp.float32)               # int8 -> f32 upcast in-kernel
        val = jnp.maximum(gamma_0 - w * s, 0.0)
        layer_sums = jnp.sum(val, axis=1, keepdims=True)  # (TILE_L, 1)
        o_ref[...] += jnp.sum(layer_sums * rs_ref[...])   # scalar partial into accumulator

    return kernel


def sign_loss_pallas(weights_slab, signs_slab, rowscale, gamma_0: float, tile_l: int):
    """weights_slab: f32[L_pad, C_pad]; signs_slab: int8[L_pad, C_pad];
    rowscale: f32[L_pad, 1] (= 1/C_l for real layers, 0 for padded rows)."""
    L_pad, C_pad = weights_slab.shape
    assert L_pad % tile_l == 0 and tile_l % 8 == 0
    n_blocks = L_pad // tile_l

    kernel = _make_sign_loss_kernel(float(gamma_0))
    out = pl.pallas_call(
        kernel,
        out_shape=jax.ShapeDtypeStruct((1, 1), jnp.float32),
        grid_spec=pltpu.PrefetchScalarGridSpec(
            num_scalar_prefetch=0,
            grid=(n_blocks,),
            in_specs=[
                pl.BlockSpec((tile_l, C_pad), lambda i: (i, 0)),  # weights (f32)
                pl.BlockSpec((tile_l, C_pad), lambda i: (i, 0)),  # signs   (int8)
                pl.BlockSpec((tile_l, 1), lambda i: (i, 0)),      # per-layer 1/C_l
            ],
            out_specs=pl.BlockSpec((1, 1), lambda i: (0, 0)),     # resident accumulator
        ),
        compiler_params=pltpu.CompilerParams(
            dimension_semantics=("arbitrary",),   # reduction axis (shared accumulator)
            vmem_limit_bytes=32 * 1024 * 1024,    # explicit, safe on v5e/v6e/v7x
        ),
    )(weights_slab, signs_slab, rowscale)
    return out[0, 0]


def sign_loss(weights_slab, signs_slab, rowscale, gamma_0, tile_l, *, force_pallas=False):
    """Dispatch: at tiny sizes the pallas_call fixed cost dominates, so let XLA
    fuse relu+mul+sum; use the Pallas kernel for real model sizes."""
    if not force_pallas and weights_slab.size < (1 << 16):
        val = jnp.maximum(gamma_0 - weights_slab * signs_slab.astype(jnp.float32), 0.0)
        return jnp.sum(jnp.sum(val, axis=1, keepdims=True) * rowscale)
    return sign_loss_pallas(weights_slab, signs_slab, rowscale, gamma_0, tile_l)


# ----------------------------------------------------------------------------
# Glue: build synthetic "model" norm-layer weights, stack into padded slabs.
# ----------------------------------------------------------------------------
def _round_up(x, m):
    return (x + m - 1) // m * m


def _choose_tile_l(n_layers, c_pad, budget_bytes=2 * 1024 * 1024):
    # Bytes streamed per layer-row per step (f32 weights + int8 signs), double-buffered.
    per_row = c_pad * (4 + 1) * 2
    tile = budget_bytes // max(per_row, 1)
    tile = max(32, (tile // 32) * 32)           # multiple of 32: matches int8 (32,128) tiling
    tile = min(tile, _round_up(max(n_layers, 1), 32))
    return tile


_PAD_WEIGHT = 1e30  # relu(gamma_0 - 1e30) == 0 exactly -> padded elems contribute nothing


def build_sign_loss_inputs(channel_counts, string, key):
    """Mimics SignLossModel.__init__/_create_signs on a synthetic model."""
    bit_gen = BitGenerator(string)

    weights, signs = [], []
    for c in channel_counts:
        key, sub = jax.random.split(key)
        # synthetic norm-layer weight (would normally come from the model)
        w = jax.random.normal(sub, (c,), dtype=jnp.float32)
        sgn = jnp.asarray(bit_gen.get(c), dtype=jnp.float32) * 2.0 - 1.0
        # _create_signs: weight.data.abs_().mul_(sign)
        w = jnp.abs(w) * sgn
        weights.append(w)
        signs.append(sgn)

    n_layers = len(channel_counts)
    c_max = max(channel_counts)
    c_pad = _round_up(max(c_max, 1), 128)
    tile_l = _choose_tile_l(n_layers, c_pad)
    l_pad = _round_up(max(n_layers, 1), tile_l)

    w_slab = np.full((l_pad, c_pad), _PAD_WEIGHT, dtype=np.float32)
    s_slab = np.ones((l_pad, c_pad), dtype=np.int8)
    rowscale = np.zeros((l_pad, 1), dtype=np.float32)
    for l, (w, sgn, c) in enumerate(zip(weights, signs, channel_counts)):
        w_slab[l, :c] = np.asarray(w)
        s_slab[l, :c] = np.asarray(sgn).astype(np.int8)
        rowscale[l, 0] = 1.0 / float(c)

    return (
        jnp.asarray(w_slab),
        jnp.asarray(s_slab),
        jnp.asarray(rowscale),
        tile_l,
        weights,
        signs,
    )


def sign_loss_reference(weights, signs, gamma_0):
    """Pure-JAX reference matching the PyTorch forward exactly."""
    loss = jnp.float32(0.0)
    for w, sgn in zip(weights, signs):
        loss = loss + jnp.mean(jnp.maximum(gamma_0 - w * sgn, 0.0))
    return loss


if __name__ == "__main__":
    gamma_0 = 0.5
    config_string = "sign"              # deterministic bit stream (config.string)
    channel_counts = [4, 16, 32, 64]    # synthetic norm layers in the "model"

    key = jax.random.PRNGKey(0)
    w_slab, s_slab, rowscale, tile_l, weights, signs = build_sign_loss_inputs(
        channel_counts, config_string, key
    )

    # force_pallas so the kernel path is exercised even at demo sizes
    loss = sign_loss(w_slab, s_slab, rowscale, gamma_0, tile_l, force_pallas=True)
    loss = jax.block_until_ready(loss)

    ref = sign_loss_reference(weights, signs, gamma_0)
    np.testing.assert_allclose(np.asarray(loss), np.asarray(ref), rtol=1e-5, atol=1e-5)

    print("KERNEL_OK")
</pallas_src>

<mosaic_0001>
module attributes {stable_mosaic.version = 11 : i64} {
  func.func @kernel(%arg0: i32, %arg1: memref<32x128xf32, #tpu.memory_space<vmem>>, %arg2: memref<32x128xi8, #tpu.memory_space<vmem>>, %arg3: memref<32x1xf32, #tpu.memory_space<vmem>>, %arg4: memref<1x1xf32, #tpu.memory_space<vmem>>) attributes {dimension_semantics = [#tpu.dimension_semantics<arbitrary>], iteration_bounds = array<i64: 1>, scalar_prefetch = 0 : i64, scratch_operands = 0 : i64, tpu.core_type = #tpu.core_type<tc>, window_params = [{transform_indices = @transform_0, window_bounds = array<i64: 32, 128>}, {transform_indices = @transform_1, window_bounds = array<i64: 32, 128>}, {transform_indices = @transform_2, window_bounds = array<i64: 32, 1>}, {pipeline_mode = #tpu.pipeline_mode<synchronous>, transform_indices = @transform_3, window_bounds = array<i64: 1, 1>}]} {
    %c0_i32 = arith.constant 0 : i32
    %0 = arith.cmpi eq, %arg0, %c0_i32 : i32
    %1 = arith.extui %0 : i1 to i32
    %c0_i32_0 = arith.constant 0 : i32
    %2 = arith.cmpi ne, %1, %c0_i32_0 : i32
    scf.if %2 {
      %cst_13 = arith.constant 0.000000e+00 : f32
      %23 = vector.broadcast %cst_13 : f32 to vector<1x1xf32>
      %c0_14 = arith.constant 0 : index
      %c0_15 = arith.constant 0 : index
      %24 = vector.load %arg4[%c0_14, %c0_15] : memref<1x1xf32, #tpu.memory_space<vmem>>, vector<1x1xf32>
      tpu.vector_store %arg4[%c0_14, %c0_15], %23 {strides = array<i32>} : memref<1x1xf32, #tpu.memory_space<vmem>>, vector<1x1xf32>,
    } else {
    }
    %c0 = arith.constant 0 : index
    %c0_1 = arith.constant 0 : index
    %3 = vector.load %arg1[%c0, %c0_1] : memref<32x128xf32, #tpu.memory_space<vmem>>, vector<32x128xf32>
    %c0_2 = arith.constant 0 : index
    %c0_3 = arith.constant 0 : index
    %4 = vector.load %arg2[%c0_2, %c0_3] : memref<32x128xi8, #tpu.memory_space<vmem>>, vector<32x128xi8>
    %5 = arith.sitofp %4 : vector<32x128xi8> to vector<32x128xf32>
    %6 = arith.mulf %3, %5 : vector<32x128xf32>
    %cst = arith.constant 5.000000e-01 : f32
    %7 = vector.broadcast %cst : f32 to vector<32x128xf32>
    %8 = arith.subf %7, %6 : vector<32x128xf32>
    %cst_4 = arith.constant 0.000000e+00 : f32
    %9 = vector.broadcast %cst_4 : f32 to vector<32x128xf32>
    %10 = arith.maximumf %8, %9 : vector<32x128xf32>
    %cst_5 = arith.constant dense<0.000000e+00> : vector<32xf32>
    %11 = vector.multi_reduction <add>, %10, %cst_5 [1] : vector<32x128xf32> to vector<32xf32>
    %12 = vector.shape_cast %11 : vector<32xf32> to vector<32x1xf32>
    %c0_6 = arith.constant 0 : index
    %c0_7 = arith.constant 0 : index
    %13 = vector.load %arg4[%c0_6, %c0_7] : memref<1x1xf32, #tpu.memory_space<vmem>>, vector<1x1xf32>
    %c0_8 = arith.constant 0 : index
    %c0_9 = arith.constant 0 : index
    %14 = vector.load %arg3[%c0_8, %c0_9] : memref<32x1xf32, #tpu.memory_space<vmem>>, vector<32x1xf32>
    %15 = arith.mulf %12, %14 : vector<32x1xf32>
    %16 = vector.shape_cast %15 : vector<32x1xf32> to vector<1x32x1xf32>
    %cst_10 = arith.constant dense<0.000000e+00> : vector<1xf32>
    %17 = vector.multi_reduction <add>, %16, %cst_10 [1, 2] : vector<1x32x1xf32> to vector<1xf32>
    %18 = vector.shape_cast %17 : vector<1xf32> to vector<1x1x1xf32>
    %19 = vector.extract %18[0, 0, 0] : f32 from vector<1x1x1xf32>
    %20 = vector.broadcast %19 : f32 to vector<1x1xf32>
    %21 = arith.addf %13, %20 : vector<1x1xf32>
    %c0_11 = arith.constant 0 : index
    %c0_12 = arith.constant 0 : index
    %22 = vector.load %arg4[%c0_11, %c0_12] : memref<1x1xf32, #tpu.memory_space<vmem>>, vector<1x1xf32>
    tpu.vector_store %arg4[%c0_11, %c0_12], %21 {strides = array<i32>} : memref<1x1xf32, #tpu.memory_space<vmem>>, vector<1x1xf32>,
    return
  }
  func.func @transform_0(%arg0: i32) -> (i32, i32) {
    %c0_i32 = arith.constant 0 : i32
    %c0_i32_0 = arith.constant 0 : i32
    return %arg0, %c0_i32 : i32, i32
  }
  func.func @transform_1(%arg0: i32) -> (i32, i32) {
    %c0_i32 = arith.constant 0 : i32
    %c0_i32_0 = arith.constant 0 : i32
    return %arg0, %c0_i32 : i32, i32
  }
  func.func @transform_2(%arg0: i32) -> (i32, i32) {
    %c0_i32 = arith.constant 0 : i32
    %c0_i32_0 = arith.constant 0 : i32
    return %arg0, %c0_i32 : i32, i32
  }
  func.func @transform_3(%arg0: i32) -> (i32, i32) {
    %c0_i32 = arith.constant 0 : i32
    %c0_i32_0 = arith.constant 0 : i32
    %c0_i32_1 = arith.constant 0 : i32
    return %c0_i32, %c0_i32_0 : i32, i32
  }
}

</mosaic_0001>

<llo_original>
// kernel: tpu_custom_call.1
$region0: #{tpu_custom_call.1}
  #allocation0 [shape = 'u32[]', space=smem, size = 0x4, offset = 0x4, fixed_abs, tag = 'smem constant byte address 0x4 - core index']
  #allocation1 [shape = 'u32[144,128]{1,0:T(1,128)}', space=vmem, size = 0x12000, scoped, tag = 'internal scratch']
  %s0 = inlined_call_operand.vmem [shape: f32[32,128], index: 0, kind: input, shape index: {}]
  %s1 = inlined_call_operand.hbm [shape: s8[32,128], index: 1, kind: input, shape index: {}]
  %s2 = inlined_call_operand.vmem [shape: f32[32,1], index: 2, kind: input, shape index: {}]
  %s3 = inlined_call_operand.hbm [shape: f32[1,1], index: 3, kind: output, shape index: {}]
  %s4 = sld [smem:[#allocation0]]
  $region30: #{tpu_custom_call.1} parent=0
    _
  %s6 = ssub.s32 1, %s4
  %s7 = scalar_select 0, %s6, %s4
  $region1: #{tpu_custom_call.1} parent=0
    #allocation2 [shape = 'u8[4096]{0}', space=vmem, size = 0x1000, scoped, tag = 'input window, operand 1, single buffered']
    #allocation3 [shape = 's32[1]{0}', space=sflag, size = 0x4, scoped, tag = 'scoped memory for tpu_custom_call.1']
    #allocation4 [shape = 's32[1]{0}', space=sflag, size = 0x4, scoped, tag = 'scoped memory for tpu_custom_call.1']
    #allocation5 [shape = 'u8[512]{0}', space=vmem, size = 0x400, scoped, tag = 'output window, operand 0, single buffered']
    %8 = vsyncpa [#allocation3], 0
    %9 = vsyncpa [#allocation4], 0
    // Predicated region
    $region2: #{tpu_custom_call.1} parent=1 // pred_check
      _
    $region3: #{tpu_custom_call.1} parent=1 // pred_check_branch
      %11 = sbr.rel (0) target = $region5
    $region4: #{tpu_custom_call.1} parent=1 // pred_region
      _
    $region5: #{tpu_custom_call.1} parent=1 // pred_fallthru
      _
    // Predicated region
    $region6: #{tpu_custom_call.1} parent=1 // pred_check
      _
    $region7: #{tpu_custom_call.1} parent=1 // pred_check_branch
      %13 = sbr.rel (0) target = $region9
    $region8: #{tpu_custom_call.1} parent=1 // pred_region
      %s15 = ssub.s32 128, 128
      %16 = vsyncadd [#allocation3], %s15
      %s18 = sshll.u32 [#allocation2], 4
      %s19 = int_to_ptr.vmem [resolvable:$true] %s18
      %21 = dma.hbm_to_vmem [thread:$0]  %s1, 128, %s19, [#allocation3]
    $region9: #{tpu_custom_call.1} parent=1 // pred_fallthru
      _
    // Predicated region
    $region10: #{tpu_custom_call.1} parent=1 // pred_check
      _
    $region11: #{tpu_custom_call.1} parent=1 // pred_check_branch
      %23 = sbr.rel (0) target = $region13
    $region12: #{tpu_custom_call.1} parent=1 // pred_region
      _
    $region13: #{tpu_custom_call.1} parent=1 // pred_fallthru
      _
    // Predicated region
    $region14: #{tpu_custom_call.1} parent=1 // pred_check
      _
    $region15: #{tpu_custom_call.1} parent=1 // pred_check_branch
      %25 = sbr.rel (0) target = $region17
    $region16: #{tpu_custom_call.1} parent=1 // pred_region
      %26 = dma.done [#allocation3], 128
    $region17: #{tpu_custom_call.1} parent=1 // pred_fallthru
      _
    %p27 = scmp.eq.s32.totalorder 0, 0
    // Predicated region
    $region18: #{tpu_custom_call.1} parent=1 // pred_check
      %p28 = pneg %p27
    $region19: #{tpu_custom_call.1} parent=1 // pred_check_branch
      %30 = sbr.rel (%p28) target = $region21
    $region20: #{tpu_custom_call.1} parent=1 // pred_region
      %vm31 = vcmask 0
      %32 = vst.msk [vmem:[#allocation5] sm:$0x1] %vm31, 0.0
    $region21: #{tpu_custom_call.1} parent=1 // pred_fallthru
      _
    %v33 = vld [vmem:[%s0] sm:$0xff]
    %v34 = vld [vmem:[%s0 + $0x8] sm:$0xff]
    %v35 = vld [vmem:[%s0 + $0x10] sm:$0xff]
    %v36 = vld [vmem:[%s0 + $0x18] sm:$0xff]
    %v37 = vld [vmem:[#allocation2] sm:$0xff]
    %v38 = vunpack.c.0.s8 %v37
    %v39 = vunpack.c.1.s8 %v37
    %v40 = vunpack.c.2.s8 %v37
    %v41 = vunpack.c.3.s8 %v37
    %v42 = vcvt.s32.f32 %v38
    %v43 = vcvt.s32.f32 %v39
    %v44 = vcvt.s32.f32 %v40
    %v45 = vcvt.s32.f32 %v41
    %v46 = vmul.f32 %v33, %v42
    %v47 = vmul.f32 %v34, %v43
    %v48 = vmul.f32 %v35, %v44
    %v49 = vmul.f32 %v36, %v45
    %v50 = vsub.f32 0.5, %v46
    %v51 = vsub.f32 0.5, %v47
    %v52 = vsub.f32 0.5, %v48
    %v53 = vsub.f32 0.5, %v49
    %v54 = vmax.f32 %v50, 0.0
    %v55 = vmax.f32 %v51, 0.0
    %v56 = vmax.f32 %v52, 0.0
    %v57 = vmax.f32 %v53, 0.0
    %58 = vadd.xlane.f32.xlu0 %v54
    %v59 = vpop.xlane.xlu0 %58
    %60 = vadd.xlane.f32.xlu0 %v55
    %v61 = vpop.xlane.xlu0 %60
    %62 = vadd.xlane.f32.xlu0 %v56
    %v63 = vpop.xlane.xlu0 %62
    %64 = vadd.xlane.f32.xlu0 %v57
    %v65 = vpop.xlane.xlu0 %64
    %v66 = vld [vmem:[#allocation5] sm:$0x1]
    %v67 = vld [vmem:[%s2] sm:$0xff]
    %v68 = vld [vmem:[%s2 + $0x8] sm:$0xff]
    %v69 = vld [vmem:[%s2 + $0x10] sm:$0xff]
    %v70 = vld [vmem:[%s2 + $0x18] sm:$0xff]
    %v71 = vmul.f32 %v59, %v67
    %v72 = vmul.f32 %v61, %v68
    %v73 = vmul.f32 %v63, %v69
    %v74 = vmul.f32 %v65, %v70
    %vm75 = vcmask 7168
    %v76 = vsel %vm75, %v71, 0.0
    %v77 = vsel %vm75, %v72, 0.0
    %v78 = vadd.f32 %v76, %v77
    %v79 = vsel %vm75, %v73, 0.0
    %v80 = vadd.f32 %v78, %v79
    %v81 = vsel %vm75, %v74, 0.0
    %v82 = vadd.f32 %v80, %v81
    %83 = vadd.xlane.f32.xlu0 %v82
    %v84 = vpop.xlane.xlu0 %83
    %v85 = vrot.slane %v84, 4
    %v86 = vadd.f32 %v84, %v85
    %v87 = vrot.slane %v86, 2
    %v88 = vadd.f32 %v86, %v87
    %v89 = vrot.slane %v88, 1
    %v90 = vadd.f32 %v88, %v89
    %s91 = vtos %v90
    %v92 = vstv %s91
    %v93 = vadd.f32 %v66, %v92
    %vm94 = vcmask 0
    %95 = vst.msk [vmem:[#allocation5] sm:$0x1] %vm94, %v93
    // Predicated region
    $region22: #{tpu_custom_call.1} parent=1 // pred_check
      _
    $region23: #{tpu_custom_call.1} parent=1 // pred_check_branch
      %97 = sbr.rel (0) target = $region25
    $region24: #{tpu_custom_call.1} parent=1 // pred_region
      %s99 = ssub.s32 16, 16
      %100 = vsyncadd [#allocation4], %s99
      %s102 = sshll.u32 [#allocation5], 4
      %s103 = int_to_ptr.vmem [resolvable:$true] %s102
      %105 = dma.vmem_to_hbm [thread:$0]  %s103, 16, %s3, [#allocation4]
    $region25: #{tpu_custom_call.1} parent=1 // pred_fallthru
      _
    // Predicated region
    $region26: #{tpu_custom_call.1} parent=1 // pred_check
      _
    $region27: #{tpu_custom_call.1} parent=1 // pred_check_branch
      %107 = sbr.rel (0) target = $region29
    $region28: #{tpu_custom_call.1} parent=1 // pred_region
      %108 = dma.done [#allocation4], 16
    $region29: #{tpu_custom_call.1} parent=1 // pred_fallthru
      _
    %109 = vsyncpa [#allocation3], 1
    %110 = vsyncpa [#allocation4], 1

</llo_original>
